<compile_context>
chip_gen: v7x
topology: tpu7x:2x2x1
jax: 0.10.0
libtpu: 0.0.40
codegen_flags: <defaults>
</compile_context>

<pallas_src>
import functools
import math

import jax
import jax.numpy as jnp
from jax.experimental import pallas as pl
from jax.experimental.pallas import tpu as pltpu


_LANE = 128
_TARGET_TILE_BYTES = 2 * 1024 * 1024     # padded per-buffer x-tile DMA target
_VMEM_LIMIT_BYTES = 32 * 1024 * 1024     # explicit scoped-VMEM (safe v5e/v6e/v7x)
_VMEM_HEADROOM_BYTES = 8 * 1024 * 1024   # dropout intermediates / spill slack
_MIN_SPLIT_BYTES = 2 * 1024 * 1024       # force >=2 grid steps above this (v7x: 2 TCs)


def _round_up(x: int, m: int) -> int:
    return ((x + m - 1) // m) * m


def _sublane(itemsize: int) -> int:
    # f32 -> 8, bf16 -> 16, int8/fp8 -> 32 sublanes per vreg tile.
    return max(8, 32 // max(itemsize, 1))


# ---------------------------------------------------------------------------
# Setup (plain JAX): deterministic sinusoidal table, identical to __init__.
# In a real model, build this once in the model dtype and keep it resident.
# ---------------------------------------------------------------------------
def make_positional_encoding_table(max_seq_length: int, embed_dim: int,
                                   dtype=jnp.float32) -> jnp.ndarray:
    position = jnp.arange(max_seq_length, dtype=jnp.float32)[:, None]           # (L, 1)
    div_term = jnp.exp(
        jnp.arange(0, embed_dim, 2, dtype=jnp.float32)
        * (-math.log(10000.0) / embed_dim)
    )                                                                            # (D/2,)
    pe = jnp.zeros((max_seq_length, embed_dim), dtype=jnp.float32)
    pe = pe.at[:, 0::2].set(jnp.sin(position * div_term))
    pe = pe.at[:, 1::2].set(jnp.cos(position * div_term))
    return pe.astype(dtype)                                                      # (L, D)


# ---------------------------------------------------------------------------
# Kernels (operate on the lane-dense flattened (rows, cols) layout)
# ---------------------------------------------------------------------------
def _pe_add_kernel(x_ref, pe_ref, o_ref):
    # x_ref: (tb, tl); pe_ref: (pe_rows, tl) with pe_rows in {1, tb} -> broadcast add.
    o_ref[...] = (x_ref[...] + pe_ref[...]).astype(o_ref.dtype)


def _mix32(h):
    # murmur3 fmix32 finalizer: strong avalanche, pure VPU integer ops.
    h = h ^ (h >> 16)
    h = h * jnp.uint32(0x85EBCA6B)
    h = h ^ (h >> 13)
    h = h * jnp.uint32(0xC2B2AE35)
    h = h ^ (h >> 16)
    return h


def _pe_add_dropout_kernel(seed_ref, x_ref, pe_ref, o_ref, *,
                           keep_threshold, inv_keep, tb, tl):
    c = pl.program_id(0)          # lane-block index (outer grid axis)
    b = pl.program_id(1)          # row-block index (inner grid axis)
    y = x_ref[...] + pe_ref[...]

    # Counter-based PRNG keyed on (seed, global element coordinate): bits are
    # identical regardless of tiling and never repeat across grid steps.
    shape = y.shape
    rows = (jax.lax.broadcasted_iota(jnp.int32, shape, 0) + b * tb).astype(jnp.uint32)
    cols = (jax.lax.broadcasted_iota(jnp.int32, shape, 1) + c * tl).astype(jnp.uint32)
    seed = seed_ref[0].astype(jnp.uint32)
    h = (rows * jnp.uint32(0x9E3779B1)
         + cols * jnp.uint32(0x85EBCA77)
         + seed * jnp.uint32(0xC2B2AE3D))
    bits = _mix32(h)

    keep = bits >= jnp.uint32(keep_threshold)            # P(keep) = 1 - rate
    o_ref[...] = jnp.where(keep, y * inv_keep, jnp.zeros_like(y)).astype(o_ref.dtype)


# ---------------------------------------------------------------------------
# Layout / tiling heuristics
# ---------------------------------------------------------------------------
def _choose_fold(B: int, S: int, D: int, sublane: int) -> int:
    """Pick S1 | S so x can be viewed as (B*S1, (S/S1)*D).  S1 > 1 is chosen
    only when it removes sublane padding that the batch alone cannot fill."""
    if B >= sublane:
        return 1
    best_key, best = None, 1
    for s1 in range(1, S + 1):
        if S % s1:
            continue
        s2 = S // s1
        lane_ok = ((s2 * D) % _LANE) == 0
        rows_tile = s1 if s1 > 1 else B
        subl_ok = (rows_tile % sublane) == 0
        key = (lane_ok, subl_ok, -s1)          # lane-dense > unpadded > small fold
        if best_key is None or key > best_key:
            best_key, best = key, s1
    return best


def _choose_tiles(rows: int, cols: int, pe_rows: int, itemsize: int,
                  fold: int, sublane: int):
    """Pick (tb, tl) budgeting against the PADDED, double-buffered VMEM footprint."""
    def padded(r, l):
        return _round_up(r, sublane) * _round_up(l, _LANE) * itemsize

    # --- row (sublane) tile ---
    if fold > 1:
        tb = fold                      # one batch element's fold group per row step
    elif rows <= sublane:
        tb = rows
    else:
        row_bytes = _round_up(cols, _LANE) * itemsize
        want = max(1, _TARGET_TILE_BYTES // row_bytes)
        tb = int(min(rows, max(sublane, (want // sublane) * sublane)))

    # --- lane tile ---
    if padded(tb, cols) <= _TARGET_TILE_BYTES:
        tl = cols
    else:
        max_lanes = max(
            _LANE,
            (_TARGET_TILE_BYTES // (_round_up(tb, sublane) * itemsize)) // _LANE * _LANE,
        )
        tl = None
        cand = min(max_lanes, (cols // _LANE) * _LANE)
        while cand >= _LANE:
            if cols % cand == 0:
                tl = cand
                break
            cand -= _LANE
        if tl is None:
            tl = max_lanes             # masked tail block only on the last lane step

    # --- v7x: guarantee >=2 grid steps for non-trivial sizes (2 TensorCores) ---
    if (pl.cdiv(cols, tl) * pl.cdiv(rows, tb) == 1
            and rows * cols * itemsize > _MIN_SPLIT_BYTES):
        if cols >= 2 * _LANE:
            tl = max(_LANE, _round_up(pl.cdiv(cols, 2), _LANE))
        elif fold <= 1 and rows >= 2 * sublane:
            tb = max(sublane, _round_up(pl.cdiv(rows, 2), sublane))

    # --- padded double-buffered footprint must fit the scoped-VMEM budget ---
    budget = _VMEM_LIMIT_BYTES - _VMEM_HEADROOM_BYTES
    while tl > _LANE and 2 * (2 * padded(tb, tl) + padded(pe_rows, tl)) > budget:
        tl = max(_LANE, _round_up(tl // 2, _LANE))
    return tb, tl


# ---------------------------------------------------------------------------
# Wrapper
# ---------------------------------------------------------------------------
def positional_encoding_forward(
    x: jnp.ndarray,
    pe_table: jnp.ndarray,
    *,
    dropout_rate: float = 0.1,
    training: bool = False,
    seed: int = 0,
    donate_x: bool = False,
) -> jnp.ndarray:
    """x: (B, S, D).  pe_table: (max_seq_length, D).  Matches the PyTorch forward."""
    B, S, D = x.shape
    rate = float(dropout_rate)
    apply_dropout = training and rate > 0.0
    if apply_dropout and rate >= 1.0:
        # nn.Dropout(p=1) zeroes everything in training mode.
        return jnp.zeros_like(x)

    itemsize = jnp.dtype(x.dtype).itemsize
    sublane = _sublane(itemsize)

    # Lane-dense layout (with small-batch fold): view x as (B*S1, (S/S1)*D).
    fold = _choose_fold(B, S, D, sublane)
    s2 = S // fold
    rows, cols = B * fold, s2 * D
    pe_rows = fold if fold > 1 else 1

    x2 = x.reshape(rows, cols)                                   # contiguous view
    pe2 = pe_table[:S, :].astype(x.dtype).reshape(pe_rows, cols)  # cast is a no-op if
    #                                                              the table is pre-cast

    tb, tl = _choose_tiles(rows, cols, pe_rows, itemsize, fold, sublane)
    # Lane axis OUTER / row axis INNER: pe's block index (0, c) is unchanged
    # across consecutive steps, so its tile is not re-fetched every grid step.
    grid = (pl.cdiv(cols, tl), pl.cdiv(rows, tb))
    out_shape = jax.ShapeDtypeStruct((rows, cols), x.dtype)
    cparams = pltpu.CompilerParams(
        dimension_semantics=("parallel", "parallel"),
        vmem_limit_bytes=_VMEM_LIMIT_BYTES,
    )

    if not apply_dropout:
        # Eval mode (or p == 0): dropout is the identity.
        out2 = pl.pallas_call(
            _pe_add_kernel,
            out_shape=out_shape,
            grid_spec=pltpu.PrefetchScalarGridSpec(
                num_scalar_prefetch=0,
                grid=grid,
                in_specs=[
                    pl.BlockSpec((tb, tl), lambda c, b: (b, c)),
                    pl.BlockSpec((pe_rows, tl), lambda c, b: (0, c)),
                ],
                out_specs=pl.BlockSpec((tb, tl), lambda c, b: (b, c)),
            ),
            compiler_params=cparams,
            input_output_aliases=({0: 0} if donate_x else {}),
        )(x2, pe2)
        return out2.reshape(B, S, D)

    # Training mode: fused add + dropout (integer-threshold mask from a
    # counter-based hash PRNG; keep-prob scaling matches nn.Dropout, but the
    # RNG stream is not bit-exact with PyTorch).
    keep_threshold = min(int(round(rate * (1 << 32))), (1 << 32) - 1)
    inv_keep = 1.0 / (1.0 - rate)
    seed_arr = jnp.asarray([seed], dtype=jnp.int32)   # pass a fresh seed per step

    out2 = pl.pallas_call(
        functools.partial(
            _pe_add_dropout_kernel,
            keep_threshold=keep_threshold, inv_keep=inv_keep, tb=tb, tl=tl,
        ),
        out_shape=out_shape,
        grid_spec=pltpu.PrefetchScalarGridSpec(
            num_scalar_prefetch=1,                    # seed lives in SMEM
            grid=grid,
            in_specs=[
                pl.BlockSpec((tb, tl), lambda c, b, _s: (b, c)),
                pl.BlockSpec((pe_rows, tl), lambda c, b, _s: (0, c)),
            ],
            out_specs=pl.BlockSpec((tb, tl), lambda c, b, _s: (b, c)),
        ),
        compiler_params=cparams,
        input_output_aliases=({1: 0} if donate_x else {}),
    )(seed_arr, x2, pe2)
    return out2.reshape(B, S, D)

# TODO(synk): for end-to-end models, fuse this add(+dropout) into the adjacent
# embedding / projection kernel to avoid re-streaming the activation from HBM.


# ---------------------------------------------------------------------------
# Pure-JAX reference
# ---------------------------------------------------------------------------
def _ref_forward(x, pe_table):
    S = x.shape[1]
    return x + pe_table[None, :S, :]


if __name__ == "__main__":
    embed_dim = 32
    max_seq_length = 16
    seq_len = 8
    batch = 2

    key = jax.random.PRNGKey(0)
    x = jax.random.normal(key, (batch, seq_len, embed_dim), dtype=jnp.float32)
    pe_table = make_positional_encoding_table(max_seq_length, embed_dim)

    ref = _ref_forward(x, pe_table)

    # --- Training path (fused add + dropout), sanity-checked statistically ---
    rate = 0.5
    out_tr = positional_encoding_forward(
        x, pe_table, dropout_rate=rate, training=True, seed=123
    )
    out_tr = jax.block_until_ready(out_tr)
    assert out_tr.shape == (batch, seq_len, embed_dim)
    assert bool(jnp.all(jnp.isfinite(out_tr)))
    kept = out_tr != 0.0
    # Kept entries must equal ref / (1 - rate).
    assert jnp.allclose(
        jnp.where(kept, out_tr * (1.0 - rate), 0.0),
        jnp.where(kept, ref, 0.0),
        atol=1e-5, rtol=1e-5,
    )
    drop_frac = float(1.0 - jnp.mean(kept.astype(jnp.float32)))
    assert 0.2 < drop_frac < 0.8, f"suspicious dropout fraction {drop_frac}"

    # --- p >= 1.0 guard (nn.Dropout(p=1) zeroes the output in training) ---
    out_p1 = positional_encoding_forward(
        x, pe_table, dropout_rate=1.0, training=True, seed=7
    )
    out_p1 = jax.block_until_ready(out_p1)
    assert jnp.all(out_p1 == 0.0)

    # --- Eval path (dropout is identity), exact check ---
    out = positional_encoding_forward(x, pe_table, dropout_rate=0.1, training=False)
    out = jax.block_until_ready(out)
    assert out.shape == (batch, seq_len, embed_dim)
    assert jnp.allclose(out, ref, atol=1e-6, rtol=1e-6)

    print("KERNEL_OK")
</pallas_src>

<mosaic_0001>
module attributes {stable_mosaic.version = 11 : i64} {
  func.func @_pe_add_dropout_kernel(%arg0: i32, %arg1: i32, %arg2: memref<1xi32, #tpu.memory_space<smem>>, %arg3: memref<2x256xf32, #tpu.memory_space<vmem>>, %arg4: memref<1x256xf32, #tpu.memory_space<vmem>>, %arg5: memref<2x256xf32, #tpu.memory_space<vmem>>) attributes {dimension_semantics = [#tpu.dimension_semantics<parallel>, #tpu.dimension_semantics<parallel>], iteration_bounds = array<i64: 1, 1>, scalar_prefetch = 1 : i64, scratch_operands = 0 : i64, tpu.core_type = #tpu.core_type<tc>, window_params = [{transform_indices = @transform_0, window_bounds = array<i64: 2, 256>}, {transform_indices = @transform_1, window_bounds = array<i64: 1, 256>}, {transform_indices = @transform_2, window_bounds = array<i64: 2, 256>}]} {
    %c0 = arith.constant 0 : index
    %c0_0 = arith.constant 0 : index
    %0 = vector.load %arg3[%c0, %c0_0] : memref<2x256xf32, #tpu.memory_space<vmem>>, vector<2x256xf32>
    %c0_1 = arith.constant 0 : index
    %c0_2 = arith.constant 0 : index
    %1 = vector.load %arg4[%c0_1, %c0_2] : memref<1x256xf32, #tpu.memory_space<vmem>>, vector<1x256xf32>
    %2 = vector.broadcast %1 : vector<1x256xf32> to vector<2x256xf32>
    %3 = arith.addf %0, %2 : vector<2x256xf32>
    %4 = tpu.iota {dimensions = array<i32: 0>} : vector<2x256xi32>
    %c2_i32 = arith.constant 2 : i32
    %5 = arith.muli %arg1, %c2_i32 : i32
    %6 = vector.broadcast %5 : i32 to vector<2x256xi32>
    %7 = arith.addi %4, %6 : vector<2x256xi32>
    %8 = tpu.iota {dimensions = array<i32: 1>} : vector<2x256xi32>
    %c256_i32 = arith.constant 256 : i32
    %9 = arith.muli %arg0, %c256_i32 : i32
    %10 = vector.broadcast %9 : i32 to vector<2x256xi32>
    %11 = arith.addi %8, %10 : vector<2x256xi32>
    %c0_3 = arith.constant 0 : index
    %12 = memref.load %arg2[%c0_3] : memref<1xi32, #tpu.memory_space<smem>>
    %c-1640531535_i32 = arith.constant -1640531535 : i32
    %13 = vector.broadcast %c-1640531535_i32 : i32 to vector<2x256xi32>
    %14 = arith.muli %7, %13 : vector<2x256xi32>
    %c-2048144777_i32 = arith.constant -2048144777 : i32
    %15 = vector.broadcast %c-2048144777_i32 : i32 to vector<2x256xi32>
    %16 = arith.muli %11, %15 : vector<2x256xi32>
    %17 = arith.addi %14, %16 : vector<2x256xi32>
    %c-1028477379_i32 = arith.constant -1028477379 : i32
    %18 = arith.muli %12, %c-1028477379_i32 : i32
    %19 = vector.broadcast %18 : i32 to vector<2x256xi32>
    %20 = arith.addi %17, %19 : vector<2x256xi32>
    %c16_i32 = arith.constant 16 : i32
    %21 = vector.broadcast %c16_i32 : i32 to vector<2x256xi32>
    %22 = arith.shrui %20, %21 : vector<2x256xi32>
    %23 = arith.xori %20, %22 : vector<2x256xi32>
    %c-2048144789_i32 = arith.constant -2048144789 : i32
    %24 = vector.broadcast %c-2048144789_i32 : i32 to vector<2x256xi32>
    %25 = arith.muli %23, %24 : vector<2x256xi32>
    %c13_i32 = arith.constant 13 : i32
    %26 = vector.broadcast %c13_i32 : i32 to vector<2x256xi32>
    %27 = arith.shrui %25, %26 : vector<2x256xi32>
    %28 = arith.xori %25, %27 : vector<2x256xi32>
    %c-1028477387_i32 = arith.constant -1028477387 : i32
    %29 = vector.broadcast %c-1028477387_i32 : i32 to vector<2x256xi32>
    %30 = arith.muli %28, %29 : vector<2x256xi32>
    %c16_i32_4 = arith.constant 16 : i32
    %31 = vector.broadcast %c16_i32_4 : i32 to vector<2x256xi32>
    %32 = arith.shrui %30, %31 : vector<2x256xi32>
    %33 = arith.xori %30, %32 : vector<2x256xi32>
    %c-2147483648_i32 = arith.constant -2147483648 : i32
    %34 = vector.broadcast %c-2147483648_i32 : i32 to vector<2x256xi32>
    %35 = arith.cmpi uge, %33, %34 : vector<2x256xi32>
    %cst = arith.constant 2.000000e+00 : f32
    %36 = vector.broadcast %cst : f32 to vector<2x256xf32>
    %37 = arith.mulf %3, %36 : vector<2x256xf32>
    %cst_5 = arith.constant 0.000000e+00 : f32
    %38 = vector.broadcast %cst_5 : f32 to vector<2x256xf32>
    %39 = arith.select %35, %37, %38 : vector<2x256xi1>, vector<2x256xf32>
    %c0_6 = arith.constant 0 : index
    %c0_7 = arith.constant 0 : index
    %40 = vector.load %arg5[%c0_6, %c0_7] : memref<2x256xf32, #tpu.memory_space<vmem>>, vector<2x256xf32>
    tpu.vector_store %arg5[%c0_6, %c0_7], %39 {strides = array<i32>} : memref<2x256xf32, #tpu.memory_space<vmem>>, vector<2x256xf32>,
    return
  }
  func.func @transform_0(%arg0: i32, %arg1: i32, %arg2: memref<1xi32, #tpu.memory_space<smem>>) -> (i32, i32) {
    %c0_i32 = arith.constant 0 : i32
    return %arg1, %arg0 : i32, i32
  }
  func.func @transform_1(%arg0: i32, %arg1: i32, %arg2: memref<1xi32, #tpu.memory_space<smem>>) -> (i32, i32) {
    %c0_i32 = arith.constant 0 : i32
    %c0_i32_0 = arith.constant 0 : i32
    return %c0_i32, %arg0 : i32, i32
  }
  func.func @transform_2(%arg0: i32, %arg1: i32, %arg2: memref<1xi32, #tpu.memory_space<smem>>) -> (i32, i32) {
    %c0_i32 = arith.constant 0 : i32
    return %arg1, %arg0 : i32, i32
  }
}

</mosaic_0001>

<llo_original>
// kernel: tpu_custom_call.1
$region0: #{tpu_custom_call.1}
  #allocation0 [shape = 'u32[]', space=smem, size = 0x4, offset = 0x4, fixed_abs, tag = 'smem constant byte address 0x4 - core index']
  #allocation1 [shape = 'u32[144,128]{1,0:T(1,128)}', space=vmem, size = 0x12000, scoped, tag = 'internal scratch']
  #allocation2 [shape = 's32[1]{0}', space=sflag, size = 0x4, scoped, tag = 'scoped memory for tpu_custom_call.1']
  #allocation3 [shape = 's32[1]{0:T(128)S(6)}', space=smem, size = 0x200, scoped, tag = 'prefetched SMEM operand 0']
  %s0 = inlined_call_operand.<no memory space> [shape: s32[1], index: 0, kind: input, shape index: {}]
  %s1 = inlined_call_operand.hbm [shape: f32[2,256], index: 1, kind: input, shape index: {}]
  %s2 = inlined_call_operand.vmem [shape: f32[1,256], index: 2, kind: input, shape index: {}]
  %s3 = inlined_call_operand.hbm [shape: f32[2,256], index: 3, kind: output, shape index: {}]
  %s4 = sld [smem:[#allocation0]]
  $region22: #{tpu_custom_call.1} parent=0
    _
  %s6 = ssub.s32 1, %s4
  %s7 = scalar_select 0, %s6, %s4
  %8 = sst [smem:[#allocation3]] %s0
  $region1: #{tpu_custom_call.1} parent=0
    #allocation4 [shape = 'u8[2048]{0}', space=vmem, size = 0x800, scoped, tag = 'input window, operand 1, single buffered']
    #allocation5 [shape = 's32[1]{0}', space=sflag, size = 0x4, scoped, tag = 'scoped memory for tpu_custom_call.1']
    #allocation6 [shape = 's32[1]{0}', space=sflag, size = 0x4, scoped, tag = 'scoped memory for tpu_custom_call.1']
    #allocation7 [shape = 'u8[2048]{0}', space=vmem, size = 0x800, scoped, tag = 'output window, operand 0, single buffered']
    %9 = vsyncpa [#allocation5], 0
    %10 = vsyncpa [#allocation6], 0
    // Predicated region
    $region2: #{tpu_custom_call.1} parent=1 // pred_check
      _
    $region3: #{tpu_custom_call.1} parent=1 // pred_check_branch
      %12 = sbr.rel (0) target = $region5
    $region4: #{tpu_custom_call.1} parent=1 // pred_region
      %s14 = ssub.s32 64, 64
      %15 = vsyncadd [#allocation5], %s14
      %s17 = sshll.u32 [#allocation4], 4
      %s18 = int_to_ptr.vmem [resolvable:$true] %s17
      %20 = dma.hbm_to_vmem [thread:$0]  %s1, 64, %s18, [#allocation5]
    $region5: #{tpu_custom_call.1} parent=1 // pred_fallthru
      _
    // Predicated region
    $region6: #{tpu_custom_call.1} parent=1 // pred_check
      _
    $region7: #{tpu_custom_call.1} parent=1 // pred_check_branch
      %22 = sbr.rel (0) target = $region9
    $region8: #{tpu_custom_call.1} parent=1 // pred_region
      _
    $region9: #{tpu_custom_call.1} parent=1 // pred_fallthru
      _
    // Predicated region
    $region10: #{tpu_custom_call.1} parent=1 // pred_check
      _
    $region11: #{tpu_custom_call.1} parent=1 // pred_check_branch
      %24 = sbr.rel (0) target = $region13
    $region12: #{tpu_custom_call.1} parent=1 // pred_region
      %25 = dma.done [#allocation5], 64
    $region13: #{tpu_custom_call.1} parent=1 // pred_fallthru
      _
    %v26 = vld [vmem:[#allocation4] sm:$0xf]
    %v27 = vld [vmem:[%s2] sm:$0x3]
    %v29 = vlaneseq
    %v30 = vshrl.u32 %v29, 7
    %v31 = vsub.s32 0, %v30
    %v32 = vrot.slane %v27, %v31
    %v33 = vlaneseq
    %v34 = vshrl.u32 %v33, 7
    %v35 = vsub.s32 1, %v34
    %v36 = vrot.slane %v27, %v35
    %v37 = vcombine.low %v32, %v36
    %v39 = vunpack.c.l.s4 1983009808
    %v40 = vunpack.c.0.s8 %v39
    %v41 = vlaneseq
    %v42 = vshrl.u32 %v41, 7
    %v43 = vsub.s32 %v40, %v42
    %v44 = vrot.slane %v37, %v43
    %v46 = vadd.f32 %v26, %v44
    %v47 = vlaneseq
    %v48 = vshrl.u32 %v47, 7
    %s49 = smul.u32 0, 2
    %v50 = vstv %s49
    %v51 = vadd.s32 %v48, %v50
    %v52 = vlaneseq
    %v53 = vand.u32 %v52, 127
    %v54 = vadd.s32 %v53, 128
    %s55 = smul.u32 0, 256
    %v56 = vstv %s55
    %v57 = vadd.s32 %v53, %v56
    %v58 = vadd.s32 %v54, %v56
    %s59 = sld [smem:[#allocation3]]
    %v60 = vmul.u32 %v51, 2654435761
    %v61 = vmul.u32 %v57, 2246822519
    %v62 = vmul.u32 %v58, 2246822519
    %v63 = vadd.s32 %v60, %v61
    %v64 = vadd.s32 %v60, %v62
    %s65 = smul.u32 %s59, 3266489917
    %v66 = vstv %s65
    %v67 = vadd.s32 %v63, %v66
    %v68 = vadd.s32 %v64, %v66
    %v69 = vshrl.u32 %v67, 16
    %v70 = vshrl.u32 %v68, 16
    %v71 = vxor.u32 %v67, %v69
    %v72 = vxor.u32 %v68, %v70
    %v73 = vmul.u32 %v71, 2246822507
    %v74 = vmul.u32 %v72, 2246822507
    %v75 = vshrl.u32 %v73, 13
    %v76 = vshrl.u32 %v74, 13
    %v77 = vxor.u32 %v73, %v75
    %v78 = vxor.u32 %v74, %v76
    %v79 = vmul.u32 %v77, 3266489909
    %v80 = vmul.u32 %v78, 3266489909
    %v81 = vshrl.u32 %v79, 16
    %v82 = vshrl.u32 %v80, 16
    %v83 = vxor.u32 %v79, %v81
    %v84 = vxor.u32 %v80, %v82
    %vm85 = vcmp.ge.u32.totalorder %v83, 2147483648
    %vm86 = vcmp.ge.u32.totalorder %v84, 2147483648
    %v87 = vmul.f32 %v46, 2.0
    %v90 = vunpack.c.l.s4 1983009808
    %v91 = vunpack.c.0.s8 %v90
    %v92 = vlaneseq
    %v93 = vshrl.u32 %v92, 7
    %v94 = vsub.s32 %v91, %v93
    %v95 = vrot.slane %v87, %v94
    %v96 = vcombine.high %v95, %v95
    %v99 = vsel %vm85, %v95, 0.0
    %v100 = vsel %vm86, %v96, 0.0
    %v103 = vcombine.low %v99, %v100
    %v105 = vunpack.c.l.s4 1983009808
    %v106 = vunpack.c.0.s8 %v105
    %v107 = vlaneseq
    %v108 = vshrl.u32 %v107, 7
    %v109 = vsub.s32 %v106, %v108
    %v110 = vrot.slane %v103, %v109
    %112 = vst [vmem:[#allocation7] sm:$0xf] %v110
    // Predicated region
    $region14: #{tpu_custom_call.1} parent=1 // pred_check
      _
    $region15: #{tpu_custom_call.1} parent=1 // pred_check_branch
      %114 = sbr.rel (0) target = $region17
    $region16: #{tpu_custom_call.1} parent=1 // pred_region
      %s116 = ssub.s32 64, 64
      %117 = vsyncadd [#allocation6], %s116
      %s119 = sshll.u32 [#allocation7], 4
      %s120 = int_to_ptr.vmem [resolvable:$true] %s119
      %122 = dma.vmem_to_hbm [thread:$0]  %s120, 64, %s3, [#allocation6]
    $region17: #{tpu_custom_call.1} parent=1 // pred_fallthru
      _
    // Predicated region
    $region18: #{tpu_custom_call.1} parent=1 // pred_check
      _
    $region19: #{tpu_custom_call.1} parent=1 // pred_check_branch
      %124 = sbr.rel (0) target = $region21
    $region20: #{tpu_custom_call.1} parent=1 // pred_region
      %125 = dma.done [#allocation6], 64
    $region21: #{tpu_custom_call.1} parent=1 // pred_fallthru
      _
    %126 = vsyncpa [#allocation5], 1
    %127 = vsyncpa [#allocation6], 1

</llo_original>
